<compile_context>
chip_gen: v7x
topology: tpu7x:2x2x1
jax: 0.10.0
libtpu: 0.0.40
codegen_flags: <defaults>
</compile_context>

<pallas_src>
import functools

import numpy as np
import jax
import jax.numpy as jnp
from jax import lax
from jax.experimental import pallas as pl
from jax.experimental.pallas import tpu as pltpu

_VMEM_LIMIT = 32 * 1024 * 1024  # explicit scoped-VMEM budget; safe on v5e/v6e/v7x


# ----------------------------------------------------------------------------
# align_corners=True bilinear interpolation matrix (host-side, tiny)
# ----------------------------------------------------------------------------
def _bilinear_matrix(out_size, in_size):
    if out_size == 1:
        src = np.zeros((1,), dtype=np.float64)
    else:
        src = np.arange(out_size, dtype=np.float64) * (in_size - 1) / (out_size - 1)
    lo = np.clip(np.floor(src).astype(np.int64), 0, in_size - 1)
    hi = np.minimum(lo + 1, in_size - 1)
    frac = (src - lo).astype(np.float32)
    M = np.zeros((out_size, in_size), dtype=np.float32)
    idx = np.arange(out_size)
    np.add.at(M, (idx, lo), 1.0 - frac)
    np.add.at(M, (idx, hi), frac)
    return jnp.asarray(M)


# ----------------------------------------------------------------------------
# Kernel 1: pool x onto the low-res feature grid (separable bilinear adjoint)
#   pooled[c, hf, wf] = sum_{h,w} wh[h,hf] * ww[w,wf] * x[c,h,w]
# One grid step per batch element; static unrolled loop over the few channels.
# ----------------------------------------------------------------------------
def _pool_x_kernel(x_ref, whT_ref, ww_ref, o_ref):
    # x_ref: (C, H, W); whT_ref: (Hf, H); ww_ref: (W, Wf); o_ref: (C, Hf, Wf)
    whT = whT_ref[...]
    ww = ww_ref[...]
    for c in range(x_ref.shape[0]):  # C is small and static -> unrolled
        t = jnp.dot(whT, x_ref[c], preferred_element_type=jnp.float32)   # (Hf, W)
        o_ref[c] = jnp.dot(t, ww, preferred_element_type=jnp.float32)    # (Hf, Wf)


def pool_x(x, whT, ww):
    # x: (B, C, H, W) -> (B, C, Hf, Wf)
    # NOTE: for very large images this kernel could additionally tile H with an
    # accumulator; at typical ColorDecoder resolutions the (C,H,W) block is small.
    B, C, H, W = x.shape
    Hf = whT.shape[0]
    Wf = ww.shape[1]
    return pl.pallas_call(
        _pool_x_kernel,
        out_shape=jax.ShapeDtypeStruct((B, C, Hf, Wf), jnp.float32),
        grid=(B,),
        in_specs=[
            pl.BlockSpec((None, C, H, W), lambda b: (b, 0, 0, 0)),
            pl.BlockSpec((Hf, H), lambda b: (0, 0)),
            pl.BlockSpec((W, Wf), lambda b: (0, 0)),
        ],
        out_specs=pl.BlockSpec((None, C, Hf, Wf), lambda b: (b, 0, 0, 0)),
        compiler_params=pltpu.CompilerParams(
            dimension_semantics=("parallel",),
            vmem_limit_bytes=_VMEM_LIMIT),
    )(x, whT, ww)


# ----------------------------------------------------------------------------
# Kernel 2: bilinear upsample of `low` to image resolution (align_corners=True)
# Only used when low is not None; one grid step per batch, all channels per step.
# ----------------------------------------------------------------------------
def _upsample_kernel(low_ref, wh_ref, wwT_ref, o_ref):
    # low_ref: (Cl, Hl, Wl); wh_ref: (H, Hl); wwT_ref: (Wl, W); o_ref: (Cl, H, W)
    wh = wh_ref[...]
    wwT = wwT_ref[...]
    for c in range(low_ref.shape[0]):
        t = jnp.dot(wh, low_ref[c], preferred_element_type=jnp.float32)   # (H, Wl)
        o_ref[c] = jnp.dot(t, wwT, preferred_element_type=jnp.float32)    # (H, W)


def bilinear_upsample(low, wh, wwT):
    B, Cl, Hl, Wl = low.shape
    H = wh.shape[0]
    W = wwT.shape[1]
    return pl.pallas_call(
        _upsample_kernel,
        out_shape=jax.ShapeDtypeStruct((B, Cl, H, W), jnp.float32),
        grid=(B,),
        in_specs=[
            pl.BlockSpec((None, Cl, Hl, Wl), lambda b: (b, 0, 0, 0)),
            pl.BlockSpec((H, Hl), lambda b: (0, 0)),
            pl.BlockSpec((Wl, W), lambda b: (0, 0)),
        ],
        out_specs=pl.BlockSpec((None, Cl, H, W), lambda b: (b, 0, 0, 0)),
        compiler_params=pltpu.CompilerParams(
            dimension_semantics=("parallel",),
            vmem_limit_bytes=_VMEM_LIMIT),
    )(low, wh, wwT)


# ----------------------------------------------------------------------------
# Kernel 3 (fused): conv1x1 + softmax (lane-dense (K,P)) + class queries +
# per-class attention maps, streaming x / out in HW tiles.
# ----------------------------------------------------------------------------
def _decoder_kernel(feat_ref, wT_ref, b_ref, pooled_ref, x_ref, o_ref, q_ref,
                    *, inv_hw):
    # feat_ref  : (F, Pf)  flattened low-res features (Pf = Hf*Wf)
    # wT_ref    : (K, F)   1x1-conv weight
    # b_ref     : (K, 1)   1x1-conv bias
    # pooled_ref: (C, Pf)  bilinear-pooled image channels
    # x_ref     : (C, T)   one HW tile of the image
    # o_ref     : (K, T)   one HW tile of the output
    # q_ref     : (K, C)   VMEM scratch holding the class queries for this batch
    @pl.when(pl.program_id(1) == 0)
    def _():
        # conv1x1 + softmax over classes; classes live on sublanes -> output is
        # lane-dense (Pf lanes) and needs no transposes.
        logits = jnp.dot(wT_ref[...], feat_ref[...],
                         preferred_element_type=jnp.float32) + b_ref[...]
        m = jnp.max(logits, axis=0, keepdims=True)
        e = jnp.exp(logits - m)
        seg = e / jnp.sum(e, axis=0, keepdims=True)                    # (K, Pf)
        # q[k,c] = (1/HW) * sum_p seg[k,p] * pooled[c,p]  (inv_hw uses FULL H*W)
        q_ref[...] = lax.dot_general(
            seg, pooled_ref[...], (((1,), (1,)), ((), ())),
            preferred_element_type=jnp.float32) * inv_hw               # (K, C)

    # per-class attention maps for this HW tile: out = q @ x_tile
    o_ref[...] = jnp.dot(q_ref[...], x_ref[...],
                         preferred_element_type=jnp.float32)


def _pick_hw_tile(hw, cap=32768):
    """Largest HW tile that is a multiple of 128, divides hw, and is <= cap."""
    if hw <= cap:
        return hw
    t = cap - (cap % 128)
    while t >= 128:
        if hw % t == 0:
            return t
        t -= 128
    return hw  # fallback: single full block


def fused_decoder(feat_flat, wT, bias_col, pooled_flat, x_flat, inv_hw):
    # feat_flat: (B, F, Pf); wT: (K, F); bias_col: (K, 1);
    # pooled_flat: (B, C, Pf); x_flat: (B, C, HW)   ->   (B, K, HW)
    B, F, Pf = feat_flat.shape
    K = wT.shape[0]
    C, HW = x_flat.shape[1], x_flat.shape[2]
    T = _pick_hw_tile(HW)
    kernel = functools.partial(_decoder_kernel, inv_hw=inv_hw)
    return pl.pallas_call(
        kernel,
        out_shape=jax.ShapeDtypeStruct((B, K, HW), jnp.float32),
        grid=(B, HW // T),
        in_specs=[
            pl.BlockSpec((None, F, Pf), lambda b, t: (b, 0, 0)),
            pl.BlockSpec((K, F), lambda b, t: (0, 0)),
            pl.BlockSpec((K, 1), lambda b, t: (0, 0)),
            pl.BlockSpec((None, C, Pf), lambda b, t: (b, 0, 0)),
            pl.BlockSpec((None, C, T), lambda b, t: (b, 0, t)),
        ],
        out_specs=pl.BlockSpec((None, K, T), lambda b, t: (b, 0, t)),
        scratch_shapes=[pltpu.VMEM((K, C), jnp.float32)],
        compiler_params=pltpu.CompilerParams(
            # batch is independent ("parallel" -> v7x megacore); the HW-tile
            # axis carries the q scratch computed at tile 0 -> "arbitrary".
            dimension_semantics=("parallel", "arbitrary"),
            vmem_limit_bytes=_VMEM_LIMIT),
    )(feat_flat, wT, bias_col, pooled_flat, x_flat)


# ----------------------------------------------------------------------------
# ColorDecoder forward (NCHW in / NCHW out, matching the PyTorch module)
#   params["w"]: (num_classes, feature_dim)  -- Conv2d(feature_dim, K, 1) weight
#   params["b"]: (num_classes,)              -- its bias
# ----------------------------------------------------------------------------
def color_decoder_forward(params, feature_map, x, low=None):
    B, Fd, Hf, Wf = feature_map.shape
    _, _, H, W = x.shape
    K = params["w"].shape[0]

    x = x.astype(jnp.float32)
    if low is not None:
        wh_l = _bilinear_matrix(H, low.shape[2])
        wwT_l = _bilinear_matrix(W, low.shape[3]).T
        low_up = bilinear_upsample(low.astype(jnp.float32), wh_l, wwT_l)
        x = jnp.concatenate([x, low_up], axis=1)
    C = x.shape[1]

    # align_corners=True interpolation matrices (tiny, precomputed on host)
    wh = _bilinear_matrix(H, Hf)     # (H, Hf)
    ww = _bilinear_matrix(W, Wf)     # (W, Wf)

    # Pool x onto the feature grid (replaces upsampling seg to H x W).
    pooled = pool_x(x, wh.T, ww)                         # (B, C, Hf, Wf)
    pooled_flat = pooled.reshape(B, C, Hf * Wf)          # contiguous reshape

    feat_flat = feature_map.astype(jnp.float32).reshape(B, Fd, Hf * Wf)  # no transpose
    x_flat = x.reshape(B, C, H * W)

    out = fused_decoder(
        feat_flat,
        params["w"].astype(jnp.float32),
        params["b"].reshape(K, 1).astype(jnp.float32),
        pooled_flat,
        x_flat,
        inv_hw=1.0 / float(H * W),   # FULL image H*W, independent of HW tiling
    )
    return out.reshape(B, K, H, W)


# ----------------------------------------------------------------------------
# Pure-JAX reference for verification (direct transcription of the module)
# ----------------------------------------------------------------------------
def reference_forward(params, feature_map, x, low=None):
    B, Fd, Hf, Wf = feature_map.shape
    _, _, H, W = x.shape
    K = params["w"].shape[0]
    if low is not None:
        wh_l = _bilinear_matrix(H, low.shape[2])
        ww_l = _bilinear_matrix(W, low.shape[3])
        low_up = jnp.einsum('Hh,bchw,Ww->bcHW', wh_l, low, ww_l)
        x = jnp.concatenate([x, low_up], axis=1)
    logits = jnp.einsum('bfhw,kf->bkhw', feature_map, params["w"]) \
        + params["b"].reshape(1, K, 1, 1)
    seg = jax.nn.softmax(logits, axis=1)
    wh = _bilinear_matrix(H, Hf)
    ww = _bilinear_matrix(W, Wf)
    seg_up = jnp.einsum('Hh,bkhw,Ww->bkHW', wh, seg, ww)
    q = jnp.einsum('bchw,bkhw->bkc', x, seg_up) / float(H * W)
    return jnp.einsum('bkc,bchw->bkhw', q, x)


# ----------------------------------------------------------------------------
# Demo
# ----------------------------------------------------------------------------
if __name__ == "__main__":
    num_classes = 8
    feature_dim = 32
    B, C, H, W = 2, 3, 16, 16
    Hf, Wf = 8, 8
    C_low, Hl, Wl = 2, 8, 8

    key = jax.random.PRNGKey(0)
    k1, k2, k3, k4, k5 = jax.random.split(key, 5)

    # Synthetic Conv2d(feature_dim, num_classes, 1) parameters.
    params = {
        "w": jax.random.normal(k1, (num_classes, feature_dim), jnp.float32) * 0.05,
        "b": jax.random.normal(k2, (num_classes,), jnp.float32) * 0.05,
    }
    feature_map = jax.random.normal(k3, (B, feature_dim, Hf, Wf), jnp.float32)
    x = jax.random.uniform(k4, (B, C, H, W), jnp.float32)
    low = jax.random.uniform(k5, (B, C_low, Hl, Wl), jnp.float32)

    # Path 1: low=None
    out = jax.block_until_ready(color_decoder_forward(params, feature_map, x, low=None))
    ref = jax.block_until_ready(reference_forward(params, feature_map, x, low=None))
    assert out.shape == (B, num_classes, H, W), out.shape
    np.testing.assert_allclose(np.asarray(out), np.asarray(ref), rtol=1e-4, atol=1e-4)

    # Path 2: low is not None (bilinear-upsampled and concatenated to x)
    out_l = jax.block_until_ready(color_decoder_forward(params, feature_map, x, low=low))
    ref_l = jax.block_until_ready(reference_forward(params, feature_map, x, low=low))
    assert out_l.shape == (B, num_classes, H, W), out_l.shape
    np.testing.assert_allclose(np.asarray(out_l), np.asarray(ref_l), rtol=1e-4, atol=1e-4)

    print("KERNEL_OK")
</pallas_src>

<mosaic_0001>
module attributes {stable_mosaic.version = 11 : i64} {
  func.func @_pool_x_kernel(%arg0: i32, %arg1: memref<1x3x16x16xf32, #tpu.memory_space<vmem>>, %arg2: memref<8x16xf32, #tpu.memory_space<vmem>>, %arg3: memref<16x8xf32, #tpu.memory_space<vmem>>, %arg4: memref<1x3x8x8xf32, #tpu.memory_space<vmem>>) attributes {dimension_semantics = [#tpu.dimension_semantics<parallel>], iteration_bounds = array<i64: 2>, scalar_prefetch = 0 : i64, scratch_operands = 0 : i64, tpu.core_type = #tpu.core_type<tc>, window_params = [{transform_indices = @transform_0, window_bounds = array<i64: 1, 3, 16, 16>}, {pipeline_mode = #tpu.pipeline_mode<synchronous>, transform_indices = @transform_1, window_bounds = array<i64: 8, 16>}, {pipeline_mode = #tpu.pipeline_mode<synchronous>, transform_indices = @transform_2, window_bounds = array<i64: 16, 8>}, {transform_indices = @transform_3, window_bounds = array<i64: 1, 3, 8, 8>}]} {
    %c0 = arith.constant 0 : index
    %c0_0 = arith.constant 0 : index
    %0 = vector.load %arg2[%c0, %c0_0] : memref<8x16xf32, #tpu.memory_space<vmem>>, vector<8x16xf32>
    %c0_1 = arith.constant 0 : index
    %c0_2 = arith.constant 0 : index
    %1 = vector.load %arg3[%c0_1, %c0_2] : memref<16x8xf32, #tpu.memory_space<vmem>>, vector<16x8xf32>
    %c0_3 = arith.constant 0 : index
    %c0_4 = arith.constant 0 : index
    %c0_5 = arith.constant 0 : index
    %c0_6 = arith.constant 0 : index
    %2 = vector.load %arg1[%c0_3, %c0_4, %c0_5, %c0_6] : memref<1x3x16x16xf32, #tpu.memory_space<vmem>>, vector<1x1x16x16xf32>
    %3 = vector.shape_cast %2 : vector<1x1x16x16xf32> to vector<16x16xf32>
    %cst = arith.constant dense<0.000000e+00> : vector<8x16xf32>
    %4 = tpu.matmul %0, %3, %cst {dimension_numbers = #tpu.dot_dimension_numbers<[1], [0], [0], [1], [0, 0, 1, 1], [], []>} : vector<8x16xf32>, vector<16x16xf32>, vector<8x16xf32> -> vector<8x16xf32>
    %cst_7 = arith.constant dense<0.000000e+00> : vector<8x8xf32>
    %5 = tpu.matmul %4, %1, %cst_7 {dimension_numbers = #tpu.dot_dimension_numbers<[1], [0], [0], [1], [0, 0, 1, 1], [], []>} : vector<8x16xf32>, vector<16x8xf32>, vector<8x8xf32> -> vector<8x8xf32>
    %c0_8 = arith.constant 0 : index
    %c0_9 = arith.constant 0 : index
    %c0_10 = arith.constant 0 : index
    %c0_11 = arith.constant 0 : index
    %6 = vector.load %arg4[%c0_8, %c0_9, %c0_10, %c0_11] : memref<1x3x8x8xf32, #tpu.memory_space<vmem>>, vector<1x1x8x8xf32>
    %7 = vector.shape_cast %6 : vector<1x1x8x8xf32> to vector<8x8xf32>
    %8 = vector.shape_cast %5 : vector<8x8xf32> to vector<1x1x8x8xf32>
    tpu.vector_store %arg4[%c0_8, %c0_9, %c0_10, %c0_11], %8 {strides = array<i32>} : memref<1x3x8x8xf32, #tpu.memory_space<vmem>>, vector<1x1x8x8xf32>,
    %c0_12 = arith.constant 0 : index
    %c1 = arith.constant 1 : index
    %c0_13 = arith.constant 0 : index
    %c0_14 = arith.constant 0 : index
    %9 = vector.load %arg1[%c0_12, %c1, %c0_13, %c0_14] : memref<1x3x16x16xf32, #tpu.memory_space<vmem>>, vector<1x1x16x16xf32>
    %10 = vector.shape_cast %9 : vector<1x1x16x16xf32> to vector<16x16xf32>
    %cst_15 = arith.constant dense<0.000000e+00> : vector<8x16xf32>
    %11 = tpu.matmul %0, %10, %cst_15 {dimension_numbers = #tpu.dot_dimension_numbers<[1], [0], [0], [1], [0, 0, 1, 1], [], []>} : vector<8x16xf32>, vector<16x16xf32>, vector<8x16xf32> -> vector<8x16xf32>
    %cst_16 = arith.constant dense<0.000000e+00> : vector<8x8xf32>
    %12 = tpu.matmul %11, %1, %cst_16 {dimension_numbers = #tpu.dot_dimension_numbers<[1], [0], [0], [1], [0, 0, 1, 1], [], []>} : vector<8x16xf32>, vector<16x8xf32>, vector<8x8xf32> -> vector<8x8xf32>
    %c0_17 = arith.constant 0 : index
    %c1_18 = arith.constant 1 : index
    %c0_19 = arith.constant 0 : index
    %c0_20 = arith.constant 0 : index
    %13 = vector.load %arg4[%c0_17, %c1_18, %c0_19, %c0_20] : memref<1x3x8x8xf32, #tpu.memory_space<vmem>>, vector<1x1x8x8xf32>
    %14 = vector.shape_cast %13 : vector<1x1x8x8xf32> to vector<8x8xf32>
    %15 = vector.shape_cast %12 : vector<8x8xf32> to vector<1x1x8x8xf32>
    tpu.vector_store %arg4[%c0_17, %c1_18, %c0_19, %c0_20], %15 {strides = array<i32>} : memref<1x3x8x8xf32, #tpu.memory_space<vmem>>, vector<1x1x8x8xf32>,
    %c0_21 = arith.constant 0 : index
    %c2 = arith.constant 2 : index
    %c0_22 = arith.constant 0 : index
    %c0_23 = arith.constant 0 : index
    %16 = vector.load %arg1[%c0_21, %c2, %c0_22, %c0_23] : memref<1x3x16x16xf32, #tpu.memory_space<vmem>>, vector<1x1x16x16xf32>
    %17 = vector.shape_cast %16 : vector<1x1x16x16xf32> to vector<16x16xf32>
    %cst_24 = arith.constant dense<0.000000e+00> : vector<8x16xf32>
    %18 = tpu.matmul %0, %17, %cst_24 {dimension_numbers = #tpu.dot_dimension_numbers<[1], [0], [0], [1], [0, 0, 1, 1], [], []>} : vector<8x16xf32>, vector<16x16xf32>, vector<8x16xf32> -> vector<8x16xf32>
    %cst_25 = arith.constant dense<0.000000e+00> : vector<8x8xf32>
    %19 = tpu.matmul %18, %1, %cst_25 {dimension_numbers = #tpu.dot_dimension_numbers<[1], [0], [0], [1], [0, 0, 1, 1], [], []>} : vector<8x16xf32>, vector<16x8xf32>, vector<8x8xf32> -> vector<8x8xf32>
    %c0_26 = arith.constant 0 : index
    %c2_27 = arith.constant 2 : index
    %c0_28 = arith.constant 0 : index
    %c0_29 = arith.constant 0 : index
    %20 = vector.load %arg4[%c0_26, %c2_27, %c0_28, %c0_29] : memref<1x3x8x8xf32, #tpu.memory_space<vmem>>, vector<1x1x8x8xf32>
    %21 = vector.shape_cast %20 : vector<1x1x8x8xf32> to vector<8x8xf32>
    %22 = vector.shape_cast %19 : vector<8x8xf32> to vector<1x1x8x8xf32>
    tpu.vector_store %arg4[%c0_26, %c2_27, %c0_28, %c0_29], %22 {strides = array<i32>} : memref<1x3x8x8xf32, #tpu.memory_space<vmem>>, vector<1x1x8x8xf32>,
    return
  }
  func.func @transform_0(%arg0: i32) -> (i32, i32, i32, i32) {
    %c0_i32 = arith.constant 0 : i32
    %c0_i32_0 = arith.constant 0 : i32
    %c0_i32_1 = arith.constant 0 : i32
    %c0_i32_2 = arith.constant 0 : i32
    return %arg0, %c0_i32, %c0_i32_0, %c0_i32_1 : i32, i32, i32, i32
  }
  func.func @transform_1(%arg0: i32) -> (i32, i32) {
    %c0_i32 = arith.constant 0 : i32
    %c0_i32_0 = arith.constant 0 : i32
    %c0_i32_1 = arith.constant 0 : i32
    return %c0_i32, %c0_i32_0 : i32, i32
  }
  func.func @transform_2(%arg0: i32) -> (i32, i32) {
    %c0_i32 = arith.constant 0 : i32
    %c0_i32_0 = arith.constant 0 : i32
    %c0_i32_1 = arith.constant 0 : i32
    return %c0_i32, %c0_i32_0 : i32, i32
  }
  func.func @transform_3(%arg0: i32) -> (i32, i32, i32, i32) {
    %c0_i32 = arith.constant 0 : i32
    %c0_i32_0 = arith.constant 0 : i32
    %c0_i32_1 = arith.constant 0 : i32
    %c0_i32_2 = arith.constant 0 : i32
    return %arg0, %c0_i32, %c0_i32_0, %c0_i32_1 : i32, i32, i32, i32
  }
}

</mosaic_0001>

<llo_original>
// kernel: tpu_custom_call.1
$region0: #{tpu_custom_call.1}
  #allocation0 [shape = 'u32[]', space=smem, size = 0x4, offset = 0x4, fixed_abs, tag = 'smem constant byte address 0x4 - core index']
  #allocation1 [shape = 'u32[144,128]{1,0:T(1,128)}', space=vmem, size = 0x12000, scoped, tag = 'internal scratch']
  %s0 = inlined_call_operand.hbm [shape: f32[2,3,16,16], index: 0, kind: input, shape index: {}]
  %s1 = inlined_call_operand.vmem [shape: f32[8,16], index: 1, kind: input, shape index: {}]
  %s2 = inlined_call_operand.vmem [shape: f32[16,8], index: 2, kind: input, shape index: {}]
  %s3 = inlined_call_operand.hbm [shape: f32[2,3,8,8], index: 3, kind: output, shape index: {}]
  %s4 = sld [smem:[#allocation0]]
  $region49: #{tpu_custom_call.1} parent=0
    _
  %s6 = ssub.s32 1, %s4
  %s7 = scalar_select 0, %s6, %s4
  $region1: #{tpu_custom_call.1} parent=0
    #allocation2 [shape = 'u8[49152]{0}', space=vmem, size = 0xc000, scoped, tag = 'input window, operand 0']
    #allocation3 [shape = 's32[2]{0}', space=sflag, size = 0x8, scoped, tag = 'scoped memory for tpu_custom_call.1']
    #allocation4 [shape = 's32[2]{0}', space=sflag, size = 0x8, scoped, tag = 'scoped memory for tpu_custom_call.1']
    #allocation5 [shape = 'u8[24576]{0}', space=vmem, size = 0x6000, scoped, tag = 'output window, operand 0']
    %8 = vsyncpa [#allocation3], 0
    %s9 = scalar_lea.sflag [#allocation3], 1
    %10 = vsyncpa %s9, 0
    %11 = vsyncpa [#allocation4], 0
    %s12 = scalar_lea.sflag [#allocation4], 1
    %13 = vsyncpa %s12, 0
    loop: start=0, step=1, limit=4
    $region2: #{tpu_custom_call.1} parent=1 // loop_pre_header
      _
    $region3: #{tpu_custom_call.1} parent=1 // loop_header
      %s15 = sphi 0, %s19
      %p16 = scmp.ge.s32.totalorder %s15, 4
      %s25 = sphi 0, %s27
      %s28 = sphi 0, %s25
      %s29 = sphi 0, %s28
      %s45 = sphi 0, %s29
      %s49 = sphi 0, %s49
      %s51 = sphi 0, %s49
      %s52 = sphi 0, %s51
      %s66 = sphi 0, %s52
      %s70 = sphi 0, %s70
      %s72 = sphi 0, %s70
      %s73 = sphi 0, %s72
      %s87 = sphi 0, %s73
      %s93 = sphi 0, %s95
      %s96 = sphi 0, %s93
      %s97 = sphi 0, %s96
      %s113 = sphi 0, %s97
    $region4: #{tpu_custom_call.1} parent=1 // loop_header_branch
      %18 = sbr.rel (%p16) target = $region8
    $region5: #{tpu_custom_call.1} parent=1 // loop_body
      %s20 = ssub.s32 %s15, 1
      %s21 = ssub.s32 %s15, 2
      %s22 = sadd.s32 %s15, 1
      %s23 = ssub.s32 %s15, %s22
      %p24 = scmp.eq.s32.totalorder %s23, 0
      %s26 = sadd.s32 %s25, 1
      %s27 = scalar_select %p24, %s25, %s26
      %p30 = pneg %p24
      %p31 = scmp.eq.s32.totalorder %s15, 1
      %p32 = por %p30, %p31
      %p33 = scmp.ne.s32.totalorder %s25, %s28
      %p34 = scmp.eq.s32.totalorder %s15, 0
      %p35 = por %p33, %p34
      %p36 = scmp.ne.s32.totalorder %s25, %s28
      %p37 = scmp.eq.s32.totalorder %s20, 1
      %p38 = por %p36, %p37
      %p39 = scmp.ne.s32.totalorder %s28, %s29
      %p40 = scmp.eq.s32.totalorder %s20, 0
      %p41 = por %p39, %p40
      %p42 = scmp.ne.s32.totalorder %s28, %s29
      %p43 = scmp.eq.s32.totalorder %s21, 1
      %p44 = por %p42, %p43
      %p46 = scmp.ne.s32.totalorder %s29, %s45
      %p47 = scmp.eq.s32.totalorder %s21, 0
      %p48 = por %p46, %p47
      %s50 = sadd.s32 %s49, 1
      %p53 = scmp.eq.s32.totalorder %s15, 1
      %p54 = scmp.ne.s32.totalorder %s49, %s51
      %p55 = scmp.eq.s32.totalorder %s15, 0
      %p56 = por %p54, %p55
      %p57 = scmp.ne.s32.totalorder %s49, %s51
      %p58 = scmp.eq.s32.totalorder %s20, 1
      %p59 = por %p57, %p58
      %p60 = scmp.ne.s32.totalorder %s51, %s52
      %p61 = scmp.eq.s32.totalorder %s20, 0
      %p62 = por %p60, %p61
      %p63 = scmp.ne.s32.totalorder %s51, %s52
      %p64 = scmp.eq.s32.totalorder %s21, 1
      %p65 = por %p63, %p64
      %p67 = scmp.ne.s32.totalorder %s52, %s66
      %p68 = scmp.eq.s32.totalorder %s21, 0
      %p69 = por %p67, %p68
      %s71 = sadd.s32 %s70, 1
      %p74 = scmp.eq.s32.totalorder %s15, 1
      %p75 = scmp.ne.s32.totalorder %s70, %s72
      %p76 = scmp.eq.s32.totalorder %s15, 0
      %p77 = por %p75, %p76
      %p78 = scmp.ne.s32.totalorder %s70, %s72
      %p79 = scmp.eq.s32.totalorder %s20, 1
      %p80 = por %p78, %p79
      %p81 = scmp.ne.s32.totalorder %s72, %s73
      %p82 = scmp.eq.s32.totalorder %s20, 0
      %p83 = por %p81, %p82
      %p84 = scmp.ne.s32.totalorder %s72, %s73
      %p85 = scmp.eq.s32.totalorder %s21, 1
      %p86 = por %p84, %p85
      %p88 = scmp.ne.s32.totalorder %s73, %s87
      %p89 = scmp.eq.s32.totalorder %s21, 0
      %p90 = por %p88, %p89
      %s91 = ssub.s32 %s15, %s22
      %p92 = scmp.eq.s32.totalorder %s91, 0
      %s94 = sadd.s32 %s93, 1
      %s95 = scalar_select %p92, %s93, %s94
      %p98 = pneg %p92
      %p99 = scmp.eq.s32.totalorder %s15, 1
      %p100 = por %p98, %p99
      %p101 = scmp.ne.s32.totalorder %s93, %s96
      %p102 = scmp.eq.s32.totalorder %s15, 0
      %p103 = por %p101, %p102
      %p104 = scmp.ne.s32.totalorder %s93, %s96
      %p105 = scmp.eq.s32.totalorder %s20, 1
      %p106 = por %p104, %p105
      %p107 = scmp.ne.s32.totalorder %s96, %s97
      %p108 = scmp.eq.s32.totalorder %s20, 0
      %p109 = por %p107, %p108
      %p110 = scmp.ne.s32.totalorder %s96, %s97
      %p111 = scmp.eq.s32.totalorder %s21, 1
      %p112 = por %p110, %p111
      %p114 = scmp.ne.s32.totalorder %s97, %s113
      %p115 = scmp.eq.s32.totalorder %s21, 0
      %p116 = por %p114, %p115
      %p117 = scmp.le.s32.totalorder 1, %s15
      %p118 = scmp.lt.s32.totalorder %s15, 3
      %p119 = pnand %p117, %p118
      %p120 = pneg %p119
      // Predicated region
      $region9: #{tpu_custom_call.1} parent=5 // pred_check
        _
      $region10: #{tpu_custom_call.1} parent=5 // pred_check_branch
        %122 = sbr.rel (%p119) target = $region12
      $region11: #{tpu_custom_call.1} parent=5 // pred_region
        %s123 = ssub.s32 %s15, 1
        // Predicated region
        $region13: #{tpu_custom_call.1} parent=11 // pred_check
          %p124 = pneg %p62
        $region14: #{tpu_custom_call.1} parent=11 // pred_check_branch
          %126 = sbr.rel (%p124) target = $region16
        $region15: #{tpu_custom_call.1} parent=11 // pred_region
          _
        $region16: #{tpu_custom_call.1} parent=11 // pred_fallthru
          _
        // Predicated region
        $region17: #{tpu_custom_call.1} parent=11 // pred_check
          %p127 = pneg %p83
        $region18: #{tpu_custom_call.1} parent=11 // pred_check_branch
          %129 = sbr.rel (%p127) target = $region20
        $region19: #{tpu_custom_call.1} parent=11 // pred_region
          _
        $region20: #{tpu_custom_call.1} parent=11 // pred_fallthru
          _
      $region12: #{tpu_custom_call.1} parent=5 // pred_fallthru
        _
      %p130 = scmp.lt.s32.totalorder %s15, 2
      // Predicated region
      $region21: #{tpu_custom_call.1} parent=5 // pred_check
        %p131 = pneg %p130
      $region22: #{tpu_custom_call.1} parent=5 // pred_check_branch
        %133 = sbr.rel (%p131) target = $region24
      $region23: #{tpu_custom_call.1} parent=5 // pred_region
        // Predicated region
        $region25: #{tpu_custom_call.1} parent=23 // pred_check
          %p134 = pneg %p35
        $region26: #{tpu_custom_call.1} parent=23 // pred_check_branch
          %136 = sbr.rel (%p134) target = $region28
        $region27: #{tpu_custom_call.1} parent=23 // pred_region
          %s137 = sand.u32 %s25, 1
          %s138 = scalar_lea.sflag [#allocation3], %s137
          %s139 = sand.u32 %s25, 1
          %s140 = smul.addr %s139, 48
          %s141 = scalar_lea.vmem [#allocation2], %s140
          %s143 = ssub.s32 768, 768
          %144 = vsyncadd %s138, %s143
          %s145 = smul.addr %s15, 6
          %s146 = smul.addr %s145, 128
          %s147 = scalar_lea.hbm %s0, %s146
          %s148 = sshll.u32 %s141, 4
          %s149 = int_to_ptr.vmem [resolvable:$true] %s148
          %154 = dma.hbm_to_vmem [thread:$0]  %s147, 768, %s149, %s138, 128, 128, 8
        $region28: #{tpu_custom_call.1} parent=23 // pred_fallthru
          _
      $region24: #{tpu_custom_call.1} parent=5 // pred_fallthru
        _
      %p155 = scmp.le.s32.totalorder 1, %s15
      %p156 = scmp.lt.s32.totalorder %s15, 3
      %p157 = pnand %p155, %p156
      %p158 = pneg %p157
      // Predicated region
      $region29: #{tpu_custom_call.1} parent=5 // pred_check
        _
      $region30: #{tpu_custom_call.1} parent=5 // pred_check_branch
        %160 = sbr.rel (%p157) target = $region32
      $region31: #{tpu_custom_call.1} parent=5 // pred_region
        %s161 = ssub.s32 %s15, 1
        %s162 = sand.u32 %s28, 1
        %s163 = scalar_lea.sflag [#allocation3], %s162
        %s164 = sand.u32 %s28, 1
        %s165 = smul.addr %s164, 48
        %s166 = scalar_lea.vmem [#allocation2], %s165
        // Predicated region
        $region33: #{tpu_custom_call.1} parent=31 // pred_check
          %p167 = pneg %p41
        $region34: #{tpu_custom_call.1} parent=31 // pred_check_branch
          %169 = sbr.rel (%p167) target = $region36
        $region35: #{tpu_custom_call.1} parent=31 // pred_region
          %170 = dma.done %s163, 768
        $region36: #{tpu_custom_call.1} parent=31 // pred_fallthru
          _
        %s171 = sand.u32 %s28, 1
        %s172 = scalar_lea.sflag [#allocation3], %s171
        %s173 = sand.u32 %s28, 1
        %s174 = smul.addr %s173, 48
        %s175 = scalar_lea.vmem [#allocation2], %s174
        %p176 = pneg %p41
        %p177 = pneg %p38
        %p178 = pneg %p62
        %p179 = pneg %p59
        %p180 = pneg %p83
        %p181 = pneg %p80
        %p182 = pneg %p109
        %p183 = pneg %p106
        %s184 = sand.u32 %s96, 1
        %s185 = scalar_lea.sflag [#allocation4], %s184
        %s186 = sand.u32 %s96, 1
        %s187 = smul.addr %s186, 24
        %s188 = scalar_lea.vmem [#allocation5], %s187
        %v189 = vld [vmem:[%s1] sm:$0xff]
        %v190 = vld [vmem:[%s2] sm:$0xff]
        %v191 = vld [vmem:[%s2 + $0x8] sm:$0xff]
        %v192 = vld [vmem:[%s166] sm:$0xff]
        %v193 = vld [vmem:[%s166 + $0x8] sm:$0xff]
        %vm194 = vcmask 130048
        %v196 = vsel %vm194, %v189, 0
        %198 = vmatprep.subr.mxu0 0.0
        %199 = vmatpush1.msra.mxu0 %v192
        %200 = vmatprep.subr.mxu0 0.0
        %201 = vmatpush1.msra.mxu0 %v193
        %202 = vmatprep.subr.mxu0 0.0
        %203 = vmatpush1.msra.mxu0 0.0
        %204 = vmatprep.subr.mxu0 0.0
        %205 = vmatpush1.msra.mxu0 0.0
        %206 = vmatprep.subr.mxu0 0.0
        %207 = vmatpush1.msra.mxu0 0.0
        %208 = vmatprep.subr.mxu0 0.0
        %209 = vmatpush1.msra.mxu0 0.0
        %210 = vmatprep.subr.mxu0 0.0
        %211 = vmatpush1.msra.mxu0 0.0
        %212 = vmatprep.subr.mxu0 0.0
        %213 = vmatpush1.msra.mxu0 0.0
        %214 = vmatprep.subr.mxu0 0.0
        %215 = vmatpush1.msra.mxu0 0.0
        %216 = vmatprep.subr.mxu0 0.0
        %217 = vmatpush1.msra.mxu0 0.0
        %218 = vmatprep.subr.mxu0 0.0
        %219 = vmatpush1.msra.mxu0 0.0
        %220 = vmatprep.subr.mxu0 0.0
        %221 = vmatpush1.msra.mxu0 0.0
        %222 = vmatprep.subr.mxu0 0.0
        %223 = vmatpush1.msra.mxu0 0.0
        %224 = vmatprep.subr.mxu0 0.0
        %225 = vmatpush1.msra.mxu0 0.0
        %226 = vmatprep.subr.mxu0 0.0
        %227 = vmatpush1.msra.mxu0 0.0
        %228 = vmatprep.subr.mxu0 0.0
        %229 = vmatpush1.msra.mxu0 0.0
        %230 = vmatprep.subr.mxu0 0.0
        %231 = vmatpush1.msra.mxu0 0.0
        %232 = vmatprep.subr.mxu0 0.0
        %233 = vmatpush1.msra.mxu0 0.0
        %234 = vmatprep.subr.mxu0 0.0
        %235 = vmatpush1.msra.mxu0 0.0
        %236 = vmatprep.subr.mxu0 0.0
        %237 = vmatpush1.msra.mxu0 0.0
        %238 = vmatprep.subr.mxu0 0.0
        %239 = vmatpush1.msra.mxu0 0.0
        %240 = vmatprep.subr.mxu0 0.0
        %241 = vmatpush1.msra.mxu0 0.0
        %242 = vmatprep.subr.mxu0 0.0
        %243 = vmatpush1.msra.mxu0 0.0
        %244 = vmatprep.subr.mxu0 0.0
        %245 = vmatpush1.msra.mxu0 0.0
        %246 = vmatprep.subr.mxu0 0.0
        %247 = vmatpush1.msra.mxu0 0.0
        %248 = vmatprep.subr.mxu0 0.0
        %249 = vmatpush1.msra.mxu0 0.0
        %250 = vmatprep.subr.mxu0 0.0
        %251 = vmatpush1.msra.mxu0 0.0
        %252 = vmatprep.subr.mxu0 0.0
        %253 = vmatpush1.msra.mxu0 0.0
        %254 = vmatprep.subr.mxu0 0.0
        %255 = vmatpush1.msra.mxu0 0.0
        %256 = vmatprep.subr.mxu0 0.0
        %257 = vmatpush1.msra.mxu0 0.0
        %258 = vmatprep.subr.mxu0 0.0
        %259 = vmatpush1.msra.mxu0 0.0
        %260 = vmatprep.subr.mxu0 0.0
        %261 = vmatpush1.msra.mxu0 0.0
        %262 = vmatprep.mubr.f32.mxu0 0.0
        %263 = vmatmul.mubr.f32.gmra.mrb[0].mxu0 %v196
        %v264 = vpop.f32.mrb[0].mxu0
        %v265 = vadd.f32 0.0, %v264
        %v266 = vpop.f32.mrb[0].mxu0
        %267 = vdwg.mxu0
        %v269 = vsel %vm194, %v265, 0
        %271 = vmatprep.subr.mxu0 0.0
        %272 = vmatpush1.msra.mxu0 %v190
        %273 = vmatprep.subr.mxu0 0.0
        %274 = vmatpush1.msra.mxu0 %v191
        %275 = vmatprep.subr.mxu0 0.0
        %276 = vmatpush1.msra.mxu0 0.0
        %277 = vmatprep.subr.mxu0 0.0
        %278 = vmatpush1.msra.mxu0 0.0
        %279 = vmatprep.subr.mxu0 0.0
        %280 = vmatpush1.msra.mxu0 0.0
        %281 = vmatprep.subr.mxu0 0.0
        %282 = vmatpush1.msra.mxu0 0.0
        %283 = vmatprep.subr.mxu0 0.0
        %284 = vmatpush1.msra.mxu0 0.0
        %285 = vmatprep.subr.mxu0 0.0
        %286 = vmatpush1.msra.mxu0 0.0
        %287 = vmatprep.subr.mxu0 0.0
        %288 = vmatpush1.msra.mxu0 0.0
        %289 = vmatprep.subr.mxu0 0.0
        %290 = vmatpush1.msra.mxu0 0.0
        %291 = vmatprep.subr.mxu0 0.0
        %292 = vmatpush1.msra.mxu0 0.0
        %293 = vmatprep.subr.mxu0 0.0
        %294 = vmatpush1.msra.mxu0 0.0
        %295 = vmatprep.subr.mxu0 0.0
        %296 = vmatpush1.msra.mxu0 0.0
        %297 = vmatprep.subr.mxu0 0.0
        %298 = vmatpush1.msra.mxu0 0.0
        %299 = vmatprep.subr.mxu0 0.0
        %300 = vmatpush1.msra.mxu0 0.0
        %301 = vmatprep.subr.mxu0 0.0
        %302 = vmatpush1.msra.mxu0 0.0
        %303 = vmatprep.subr.mxu0 0.0
        %304 = vmatpush1.msra.mxu0 0.0
        %305 = vmatprep.subr.mxu0 0.0
        %306 = vmatpush1.msra.mxu0 0.0
        %307 = vmatprep.subr.mxu0 0.0
        %308 = vmatpush1.msra.mxu0 0.0
        %309 = vmatprep.subr.mxu0 0.0
        %310 = vmatpush1.msra.mxu0 0.0
        %311 = vmatprep.subr.mxu0 0.0
        %312 = vmatpush1.msra.mxu0 0.0
        %313 = vmatprep.subr.mxu0 0.0
        %314 = vmatpush1.msra.mxu0 0.0
        %315 = vmatprep.subr.mxu0 0.0
        %316 = vmatpush1.msra.mxu0 0.0
        %317 = vmatprep.subr.mxu0 0.0
        %318 = vmatpush1.msra.mxu0 0.0
        %319 = vmatprep.subr.mxu0 0.0
        %320 = vmatpush1.msra.mxu0 0.0
        %321 = vmatprep.subr.mxu0 0.0
        %322 = vmatpush1.msra.mxu0 0.0
        %323 = vmatprep.subr.mxu0 0.0
        %324 = vmatpush1.msra.mxu0 0.0
        %325 = vmatprep.subr.mxu0 0.0
        %326 = vmatpush1.msra.mxu0 0.0
        %327 = vmatprep.subr.mxu0 0.0
        %328 = vmatpush1.msra.mxu0 0.0
        %329 = vmatprep.subr.mxu0 0.0
        %330 = vmatpush1.msra.mxu0 0.0
        %331 = vmatprep.subr.mxu0 0.0
        %332 = vmatpush1.msra.mxu0 0.0
        %333 = vmatprep.subr.mxu0 0.0
        %334 = vmatpush1.msra.mxu0 0.0
        %335 = vmatprep.mubr.f32.mxu0 0.0
        %336 = vmatmul.mubr.f32.gmra.mrb[0].mxu0 %v269
        %v337 = vpop.f32.mrb[0].mxu0
        %v338 = vadd.f32 0.0, %v337
        %v339 = vpop.f32.mrb[0].mxu0
        %340 = vdwg.mxu0
        %vm341 = vcmask 64512
        %342 = vst.msk [vmem:[%s188] sm:$0xff] %vm341, %v338
        %s343 = scalar_lea.vmem %s166, 16 [#allocation2]
        %v344 = vld [vmem:[%s343] sm:$0xff]
        %v345 = vld [vmem:[%s343 + $0x8] sm:$0xff]
        %346 = vmatprep.subr.mxu0 0.0
        %347 = vmatpush1.msra.mxu0 %v344
        %348 = vmatprep.subr.mxu0 0.0
        %349 = vmatpush1.msra.mxu0 %v345
        %350 = vmatprep.subr.mxu0 0.0
        %351 = vmatpush1.msra.mxu0 0.0
        %352 = vmatprep.subr.mxu0 0.0
        %353 = vmatpush1.msra.mxu0 0.0
        %354 = vmatprep.subr.mxu0 0.0
        %355 = vmatpush1.msra.mxu0 0.0
        %356 = vmatprep.subr.mxu0 0.0
        %357 = vmatpush1.msra.mxu0 0.0
        %358 = vmatprep.subr.mxu0 0.0
        %359 = vmatpush1.msra.mxu0 0.0
        %360 = vmatprep.subr.mxu0 0.0
        %361 = vmatpush1.msra.mxu0 0.0
        %362 = vmatprep.subr.mxu0 0.0
        %363 = vmatpush1.msra.mxu0 0.0
        %364 = vmatprep.subr.mxu0 0.0
        %365 = vmatpush1.msra.mxu0 0.0
        %366 = vmatprep.subr.mxu0 0.0
        %367 = vmatpush1.msra.mxu0 0.0
        %368 = vmatprep.subr.mxu0 0.0
        %369 = vmatpush1.msra.mxu0 0.0
        %370 = vmatprep.subr.mxu0 0.0
        %371 = vmatpush1.msra.mxu0 0.0
        %372 = vmatprep.subr.mxu0 0.0
        %373 = vmatpush1.msra.mxu0 0.0
        %374 = vmatprep.subr.mxu0 0.0
        %375 = vmatpush1.msra.mxu0 0.0
        %376 = vmatprep.subr.mxu0 0.0
        %377 = vmatpush1.msra.mxu0 0.0
        %378 = vmatprep.subr.mxu0 0.0
        %379 = vmatpush1.msra.mxu0 0.0
        %380 = vmatprep.subr.mxu0 0.0
        %381 = vmatpush1.msra.mxu0 0.0
        %382 = vmatprep.subr.mxu0 0.0
        %383 = vmatpush1.msra.mxu0 0.0
        %384 = vmatprep.subr.mxu0 0.0
        %385 = vmatpush1.msra.mxu0 0.0
        %386 = vmatprep.subr.mxu0 0.0
        %387 = vmatpush1.msra.mxu0 0.0
        %388 = vmatprep.subr.mxu0 0.0
        %389 = vmatpush1.msra.mxu0 0.0
        %390 = vmatprep.subr.mxu0 0.0
        %391 = vmatpush1.msra.mxu0 0.0
        %392 = vmatprep.subr.mxu0 0.0
        %393 = vmatpush1.msra.mxu0 0.0
        %394 = vmatprep.subr.mxu0 0.0
        %395 = vmatpush1.msra.mxu0 0.0
        %396 = vmatprep.subr.mxu0 0.0
        %397 = vmatpush1.msra.mxu0 0.0
        %398 = vmatprep.subr.mxu0 0.0
        %399 = vmatpush1.msra.mxu0 0.0
        %400 = vmatprep.subr.mxu0 0.0
        %401 = vmatpush1.msra.mxu0 0.0
        %402 = vmatprep.subr.mxu0 0.0
        %403 = vmatpush1.msra.mxu0 0.0
        %404 = vmatprep.subr.mxu0 0.0
        %405 = vmatpush1.msra.mxu0 0.0
        %406 = vmatprep.subr.mxu0 0.0
        %407 = vmatpush1.msra.mxu0 0.0
        %408 = vmatprep.subr.mxu0 0.0
        %409 = vmatpush1.msra.mxu0 0.0
        %410 = vmatprep.mubr.f32.mxu0 0.0
        %411 = vmatmul.mubr.f32.gmra.mrb[0].mxu0 %v196
        %v412 = vpop.f32.mrb[0].mxu0
        %v413 = vadd.f32 0.0, %v412
        %v414 = vpop.f32.mrb[0].mxu0
        %415 = vdwg.mxu0
        %v417 = vsel %vm194, %v413, 0
        %419 = vmatprep.subr.mxu0 0.0
        %420 = vmatpush1.msra.mxu0 %v190
        %421 = vmatprep.subr.mxu0 0.0
        %422 = vmatpush1.msra.mxu0 %v191
        %423 = vmatprep.subr.mxu0 0.0
        %424 = vmatpush1.msra.mxu0 0.0
        %425 = vmatprep.subr.mxu0 0.0
        %426 = vmatpush1.msra.mxu0 0.0
        %427 = vmatprep.subr.mxu0 0.0
        %428 = vmatpush1.msra.mxu0 0.0
        %429 = vmatprep.subr.mxu0 0.0
        %430 = vmatpush1.msra.mxu0 0.0
        %431 = vmatprep.subr.mxu0 0.0
        %432 = vmatpush1.msra.mxu0 0.0
        %433 = vmatprep.subr.mxu0 0.0
        %434 = vmatpush1.msra.mxu0 0.0
        %435 = vmatprep.subr.mxu0 0.0
        %436 = vmatpush1.msra.mxu0 0.0
        %437 = vmatprep.subr.mxu0 0.0
        %438 = vmatpush1.msra.mxu0 0.0
        %439 = vmatprep.subr.mxu0 0.0
        %440 = vmatpush1.msra.mxu0 0.0
        %441 = vmatprep.subr.mxu0 0.0
        %442 = vmatpush1.msra.mxu0 0.0
        %443 = vmatprep.subr.mxu0 0.0
        %444 = vmatpush1.msra.mxu0 0.0
        %445 = vmatprep.subr.mxu0 0.0
        %446 = vmatpush1.msra.mxu0 0.0
        %447 = vmatprep.subr.mxu0 0.0
        %448 = vmatpush1.msra.mxu0 0.0
        %449 = vmatprep.subr.mxu0 0.0
        %450 = vmatpush1.msra.mxu0 0.0
        %451 = vmatprep.subr.mxu0 0.0
        %452 = vmatpush1.msra.mxu0 0.0
        %453 = vmatprep.subr.mxu0 0.0
        %454 = vmatpush1.msra.mxu0 0.0
        %455 = vmatprep.subr.mxu0 0.0
        %456 = vmatpush1.msra.mxu0 0.0
        %457 = vmatprep.subr.mxu0 0.0
        %458 = vmatpush1.msra.mxu0 0.0
        %459 = vmatprep.subr.mxu0 0.0
        %460 = vmatpush1.msra.mxu0 0.0
        %461 = vmatprep.subr.mxu0 0.0
        %462 = vmatpush1.msra.mxu0 0.0
        %463 = vmatprep.subr.mxu0 0.0
        %464 = vmatpush1.msra.mxu0 0.0
        %465 = vmatprep.subr.mxu0 0.0
        %466 = vmatpush1.msra.mxu0 0.0
        %467 = vmatprep.subr.mxu0 0.0
        %468 = vmatpush1.msra.mxu0 0.0
        %469 = vmatprep.subr.mxu0 0.0
        %470 = vmatpush1.msra.mxu0 0.0
        %471 = vmatprep.subr.mxu0 0.0
        %472 = vmatpush1.msra.mxu0 0.0
        %473 = vmatprep.subr.mxu0 0.0
        %474 = vmatpush1.msra.mxu0 0.0
        %475 = vmatprep.subr.mxu0 0.0
        %476 = vmatpush1.msra.mxu0 0.0
        %477 = vmatprep.subr.mxu0 0.0
        %478 = vmatpush1.msra.mxu0 0.0
        %479 = vmatprep.subr.mxu0 0.0
        %480 = vmatpush1.msra.mxu0 0.0
        %481 = vmatprep.subr.mxu0 0.0
        %482 = vmatpush1.msra.mxu0 0.0
        %483 = vmatprep.mubr.f32.mxu0 0.0
        %484 = vmatmul.mubr.f32.gmra.mrb[0].mxu0 %v417
        %v485 = vpop.f32.mrb[0].mxu0
        %v486 = vadd.f32 0.0, %v485
        %v487 = vpop.f32.mrb[0].mxu0
        %488 = vdwg.mxu0
        %s489 = scalar_lea.vmem %s188, 8 [#allocation5]
        %490 = vst.msk [vmem:[%s489] sm:$0xff] %vm341, %v486
        %s491 = scalar_lea.vmem %s166, 32 [#allocation2]
        %v492 = vld [vmem:[%s491] sm:$0xff]
        %v493 = vld [vmem:[%s491 + $0x8] sm:$0xff]
        %494 = vmatprep.subr.mxu0 0.0
        %495 = vmatpush1.msra.mxu0 %v492
        %496 = vmatprep.subr.mxu0 0.0
        %497 = vmatpush1.msra.mxu0 %v493
        %498 = vmatprep.subr.mxu0 0.0
        %499 = vmatpush1.msra.mxu0 0.0
        %500 = vmatprep.subr.mxu0 0.0
        %501 = vmatpush1.msra.mxu0 0.0
        %502 = vmatprep.subr.mxu0 0.0
        %503 = vmatpush1.msra.mxu0 0.0
        %504 = vmatprep.subr.mxu0 0.0
        %505 = vmatpush1.msra.mxu0 0.0
        %506 = vmatprep.subr.mxu0 0.0
        %507 = vmatpush1.msra.mxu0 0.0
        %508 = vmatprep.subr.mxu0 0.0
        %509 = vmatpush1.msra.mxu0 0.0
        %510 = vmatprep.subr.mxu0 0.0
        %511 = vmatpush1.msra.mxu0 0.0
        %512 = vmatprep.subr.mxu0 0.0
        %513 = vmatpush1.msra.mxu0 0.0
        %514 = vmatprep.subr.mxu0 0.0
        %515 = vmatpush1.msra.mxu0 0.0
        %516 = vmatprep.subr.mxu0 0.0
        %517 = vmatpush1.msra.mxu0 0.0
        %518 = vmatprep.subr.mxu0 0.0
        %519 = vmatpush1.msra.mxu0 0.0
        %520 = vmatprep.subr.mxu0 0.0
        %521 = vmatpush1.msra.mxu0 0.0
        %522 = vmatprep.subr.mxu0 0.0
        %523 = vmatpush1.msra.mxu0 0.0
        %524 = vmatprep.subr.mxu0 0.0
        %525 = vmatpush1.msra.mxu0 0.0
        %526 = vmatprep.subr.mxu0 0.0
        %527 = vmatpush1.msra.mxu0 0.0
        %528 = vmatprep.subr.mxu0 0.0
        %529 = vmatpush1.msra.mxu0 0.0
        %530 = vmatprep.subr.mxu0 0.0
        %531 = vmatpush1.msra.mxu0 0.0
        %532 = vmatprep.subr.mxu0 0.0
        %533 = vmatpush1.msra.mxu0 0.0
        %534 = vmatprep.subr.mxu0 0.0
        %535 = vmatpush1.msra.mxu0 0.0
        %536 = vmatprep.subr.mxu0 0.0
        %537 = vmatpush1.msra.mxu0 0.0
        %538 = vmatprep.subr.mxu0 0.0
        %539 = vmatpush1.msra.mxu0 0.0
        %540 = vmatprep.subr.mxu0 0.0
        %541 = vmatpush1.msra.mxu0 0.0
        %542 = vmatprep.subr.mxu0 0.0
        %543 = vmatpush1.msra.mxu0 0.0
        %544 = vmatprep.subr.mxu0 0.0
        %545 = vmatpush1.msra.mxu0 0.0
        %546 = vmatprep.subr.mxu0 0.0
        %547 = vmatpush1.msra.mxu0 0.0
        %548 = vmatprep.subr.mxu0 0.0
        %549 = vmatpush1.msra.mxu0 0.0
        %550 = vmatprep.subr.mxu0 0.0
        %551 = vmatpush1.msra.mxu0 0.0
        %552 = vmatprep.subr.mxu0 0.0
        %553 = vmatpush1.msra.mxu0 0.0
        %554 = vmatprep.subr.mxu0 0.0
        %555 = vmatpush1.msra.mxu0 0.0
        %556 = vmatprep.subr.mxu0 0.0
        %557 = vmatpush1.msra.mxu0 0.0
        %558 = vmatprep.mubr.f32.mxu0 0.0
        %559 = vmatmul.mubr.f32.gmra.mrb[0].mxu0 %v196
        %v560 = vpop.f32.mrb[0].mxu0
        %v561 = vadd.f32 0.0, %v560
        %v562 = vpop.f32.mrb[0].mxu0
        %563 = vdwg.mxu0
        %v565 = vsel %vm194, %v561, 0
        %567 = vmatprep.subr.mxu0 0.0
        %568 = vmatpush1.msra.mxu0 %v190
        %569 = vmatprep.subr.mxu0 0.0
        %570 = vmatpush1.msra.mxu0 %v191
        %571 = vmatprep.subr.mxu0 0.0
        %572 = vmatpush1.msra.mxu0 0.0
        %573 = vmatprep.subr.mxu0 0.0
        %574 = vmatpush1.msra.mxu0 0.0
        %575 = vmatprep.subr.mxu0 0.0
        %576 = vmatpush1.msra.mxu0 0.0
        %577 = vmatprep.subr.mxu0 0.0
        %578 = vmatpush1.msra.mxu0 0.0
        %579 = vmatprep.subr.mxu0 0.0
        %580 = vmatpush1.msra.mxu0 0.0
        %581 = vmatprep.subr.mxu0 0.0
        %582 = vmatpush1.msra.mxu0 0.0
        %583 = vmatprep.subr.mxu0 0.0
        %584 = vmatpush1.msra.mxu0 0.0
        %585 = vmatprep.subr.mxu0 0.0
        %586 = vmatpush1.msra.mxu0 0.0
        %587 = vmatprep.subr.mxu0 0.0
        %588 = vmatpush1.msra.mxu0 0.0
        %589 = vmatprep.subr.mxu0 0.0
        %590 = vmatpush1.msra.mxu0 0.0
        %591 = vmatprep.subr.mxu0 0.0
        %592 = vmatpush1.msra.mxu0 0.0
        %593 = vmatprep.subr.mxu0 0.0
        %594 = vmatpush1.msra.mxu0 0.0
        %595 = vmatprep.subr.mxu0 0.0
        %596 = vmatpush1.msra.mxu0 0.0
        %597 = vmatprep.subr.mxu0 0.0
        %598 = vmatpush1.msra.mxu0 0.0
        %599 = vmatprep.subr.mxu0 0.0
        %600 = vmatpush1.msra.mxu0 0.0
        %601 = vmatprep.subr.mxu0 0.0
        %602 = vmatpush1.msra.mxu0 0.0
        %603 = vmatprep.subr.mxu0 0.0
        %604 = vmatpush1.msra.mxu0 0.0
        %605 = vmatprep.subr.mxu0 0.0
        %606 = vmatpush1.msra.mxu0 0.0
        %607 = vmatprep.subr.mxu0 0.0
        %608 = vmatpush1.msra.mxu0 0.0
        %609 = vmatprep.subr.mxu0 0.0
        %610 = vmatpush1.msra.mxu0 0.0
        %611 = vmatprep.subr.mxu0 0.0
        %612 = vmatpush1.msra.mxu0 0.0
        %613 = vmatprep.subr.mxu0 0.0
        %614 = vmatpush1.msra.mxu0 0.0
        %615 = vmatprep.subr.mxu0 0.0
        %616 = vmatpush1.msra.mxu0 0.0
        %617 = vmatprep.subr.mxu0 0.0
        %618 = vmatpush1.msra.mxu0 0.0
        %619 = vmatprep.subr.mxu0 0.0
        %620 = vmatpush1.msra.mxu0 0.0
        %621 = vmatprep.subr.mxu0 0.0
        %622 = vmatpush1.msra.mxu0 0.0
        %623 = vmatprep.subr.mxu0 0.0
        %624 = vmatpush1.msra.mxu0 0.0
        %625 = vmatprep.subr.mxu0 0.0
        %626 = vmatpush1.msra.mxu0 0.0
        %627 = vmatprep.subr.mxu0 0.0
        %628 = vmatpush1.msra.mxu0 0.0
        %629 = vmatprep.subr.mxu0 0.0
        %630 = vmatpush1.msra.mxu0 0.0
        %631 = vmatprep.mubr.f32.mxu0 0.0
        %632 = vmatmul.mubr.f32.gmra.mrb[0].mxu0 %v565
        %v633 = vpop.f32.mrb[0].mxu0
        %v634 = vadd.f32 0.0, %v633
        %v635 = vpop.f32.mrb[0].mxu0
        %636 = vdwg.mxu0
        %s637 = scalar_lea.vmem %s188, 16 [#allocation5]
        %638 = vst.msk [vmem:[%s637] sm:$0xff] %vm341, %v634
        %s639 = sand.u32 %s96, 1
        %s640 = scalar_lea.sflag [#allocation4], %s639
        %s641 = sand.u32 %s96, 1
        %s642 = smul.addr %s641, 24
        %s643 = scalar_lea.vmem [#allocation5], %s642
        // Predicated region
        $region37: #{tpu_custom_call.1} parent=31 // pred_check
          %p644 = pneg %p106
        $region38: #{tpu_custom_call.1} parent=31 // pred_check_branch
          %646 = sbr.rel (%p644) target = $region40
        $region39: #{tpu_custom_call.1} parent=31 // pred_region
          %s648 = ssub.s32 384, 384
          %649 = vsyncadd %s640, %s648
          %s650 = smul.addr %s20, 3
          %s651 = smul.addr %s650, 128
          %s652 = scalar_lea.hbm %s3, %s651
          %s653 = sshll.u32 %s643, 4
          %s654 = int_to_ptr.vmem [resolvable:$true] %s653
          %659 = dma.vmem_to_hbm [thread:$0]  %s654, 384, %s652, %s640, 128, 128, 8
        $region40: #{tpu_custom_call.1} parent=31 // pred_fallthru
          _
      $region32: #{tpu_custom_call.1} parent=5 // pred_fallthru
        _
      %p660 = scmp.le.s32.totalorder 2, %s15
      // Predicated region
      $region41: #{tpu_custom_call.1} parent=5 // pred_check
        %p661 = pneg %p660
      $region42: #{tpu_custom_call.1} parent=5 // pred_check_branch
        %663 = sbr.rel (%p661) target = $region44
      $region43: #{tpu_custom_call.1} parent=5 // pred_region
        %s664 = ssub.s32 %s15, 2
        // Predicated region
        $region45: #{tpu_custom_call.1} parent=43 // pred_check
          %p665 = pneg %p112
        $region46: #{tpu_custom_call.1} parent=43 // pred_check_branch
          %667 = sbr.rel (%p665) target = $region48
        $region47: #{tpu_custom_call.1} parent=43 // pred_region
          %s668 = sand.u32 %s97, 1
          %s669 = scalar_lea.sflag [#allocation4], %s668
          %s670 = sand.u32 %s97, 1
          %s671 = smul.addr %s670, 24
          %s672 = scalar_lea.vmem [#allocation5], %s671
          %673 = dma.done %s669, 384
        $region48: #{tpu_custom_call.1} parent=43 // pred_fallthru
          _
      $region44: #{tpu_custom_call.1} parent=5 // pred_fallthru
        _
    $region6: #{tpu_custom_call.1} parent=1 // loop_footer
      %s19 = sadd.s32 1, %s15
    $region7: #{tpu_custom_call.1} parent=1 // loop_footer_branch
      %14 = sbr.rel target = $region3
    $region8: #{tpu_custom_call.1} parent=1 // loop_exit
      _
    %674 = vsyncpa [#allocation3], 1
    %s675 = scalar_lea.sflag [#allocation3], 1
    %676 = vsyncpa %s675, 1
    %677 = vsyncpa [#allocation4], 1
    %s678 = scalar_lea.sflag [#allocation4], 1
    %679 = vsyncpa %s678, 1

</llo_original>
